<compile_context>
chip_gen: v7x
topology: tpu7x:2x2x1
jax: 0.10.0
libtpu: 0.0.40
codegen_flags: <defaults>
</compile_context>

<pallas_src>
import functools

import jax
import jax.numpy as jnp
from jax.experimental import pallas as pl
from jax.experimental.pallas import tpu as pltpu


def _conv_stats_kernel(p_ref, w_ref, conv_ref, sum_ref, sq_ref):
    # p_ref:   (tm, Kp)  bf16 im2col patches for this row tile
    # w_ref:   (Kp, tc)  bf16 reshaped conv weight slab for this channel tile
    # conv_ref:(tm, tc)  bf16 conv output tile (f32 MXU accumulation, stored bf16)
    # sum_ref: (8, tc)   f32 per-tile channel sums      (row 0; rows 1..7 exactly zero)
    # sq_ref:  (8, tc)   f32 per-tile channel sum-of-squares (row 0)
    acc = jnp.dot(p_ref[...], w_ref[...], preferred_element_type=jnp.float32)  # (tm, tc) f32
    conv_ref[...] = acc.astype(conv_ref.dtype)

    # Exact f32 column reductions (VALU vreg adds + one 8-sublane reduce); keeps the
    # accuracy-critical variance path off reduced-precision MXU passes entirely.
    s1 = jnp.sum(acc, axis=0, keepdims=True)            # (1, tc)
    s2 = jnp.sum(acc * acc, axis=0, keepdims=True)      # (1, tc)
    row = jax.lax.broadcasted_iota(jnp.int32, (8, acc.shape[1]), 0)
    sum_ref[...] = jnp.where(row == 0, s1, 0.0)
    sq_ref[...] = jnp.where(row == 0, s2, 0.0)


def _bn_apply_kernel(conv_ref, scale_ref, shift_ref, o_ref, *, act):
    # conv_ref: (tm, tc) bf16;  scale/shift: (1, tc) f32;  o_ref: (tm, tc) f32
    y = conv_ref[...].astype(jnp.float32) * scale_ref[...] + shift_ref[...]
    if act == "relu":
        y = jnp.maximum(y, 0.0)
    o_ref[...] = y


def conv_bn_layer(x_nchw, weight_oihw, gamma, beta, *,
                  stride=1, padding=1, act=None, eps=1e-5, tm=256):
    """Forward of ConvBNLayer. x_nchw: (N, Cin, H, W) f32, weight: (Cout, Cin, KH, KW).
    Returns (N, Cout, Hout, Wout) f32."""
    N, Cin, H, W = x_nchw.shape
    Cout, Cin_w, KH, KW = weight_oihw.shape
    assert Cin == Cin_w, "groups != 1 not supported"

    Hout = (H + 2 * padding - KH) // stride + 1
    Wout = (W + 2 * padding - KW) // stride + 1
    M = N * Hout * Wout
    K = KH * KW * Cin
    Kp = ((K + 127) // 128) * 128             # lane-dense contraction axis
    Cp = ((Cout + 127) // 128) * 128          # lane-dense channel axis
    tc = 256 if Cp % 256 == 0 else 128        # 256-wide N fills the 2x256^2 MXU (v6e/v7x)
    Cn = Cp // tc

    # Keep at least two row tiles when M allows, so the "parallel" grid axis can shard
    # across v7x's 2 TensorCores instead of leaving one idle.
    max_tm_two_tiles = max(128, ((M + 255) // 256) * 128)
    tm = max(128, min(tm, max_tm_two_tiles))
    M_pad = ((M + tm - 1) // tm) * tm
    T = M_pad // tm

    # ---------------- glue: layout + im2col (no arithmetic), staged in bf16 ----------------
    x_nhwc = jnp.transpose(x_nchw, (0, 2, 3, 1)).astype(jnp.bfloat16)
    x_p = jnp.pad(x_nhwc, ((0, 0), (padding, padding), (padding, padding), (0, 0)))
    taps = []
    for kh in range(KH):
        for kw in range(KW):
            taps.append(jax.lax.slice(
                x_p,
                (0, kh, kw, 0),
                (N, kh + stride * (Hout - 1) + 1, kw + stride * (Wout - 1) + 1, Cin),
                (1, stride, stride, 1)))
    patches = jnp.concatenate(taps, axis=-1).reshape(M, K)              # (M, KH*KW*Cin) bf16
    patches = jnp.pad(patches, ((0, M_pad - M), (0, Kp - K)))           # (M_pad, Kp) bf16

    w = jnp.transpose(weight_oihw, (2, 3, 1, 0)).reshape(K, Cout).astype(jnp.float32)
    w = jnp.pad(w, ((0, Kp - K), (0, Cp - Cout))).astype(jnp.bfloat16)  # (Kp, Cp) bf16

    # -------- pass 1: conv GEMM per (row tile, channel tile) + per-tile BN partial stats ----
    conv_out, stats_sum, stats_sq = pl.pallas_call(
        _conv_stats_kernel,
        out_shape=(jax.ShapeDtypeStruct((M_pad, Cp), jnp.bfloat16),
                   jax.ShapeDtypeStruct((T * 8, Cp), jnp.float32),
                   jax.ShapeDtypeStruct((T * 8, Cp), jnp.float32)),
        grid=(T, Cn),
        in_specs=[pl.BlockSpec((tm, Kp), lambda i, j: (i, 0)),
                  pl.BlockSpec((Kp, tc), lambda i, j: (0, j))],
        out_specs=(pl.BlockSpec((tm, tc), lambda i, j: (i, j)),
                   pl.BlockSpec((8, tc), lambda i, j: (i, j)),
                   pl.BlockSpec((8, tc), lambda i, j: (i, j))),
        compiler_params=pltpu.CompilerParams(
            dimension_semantics=("parallel", "parallel")),
    )(patches, w)

    # -------- finalize BN stats ONCE (tiny, plain jnp; exact f32) --------
    s = jnp.sum(stats_sum, axis=0, keepdims=True)                       # (1, Cp)
    ss = jnp.sum(stats_sq, axis=0, keepdims=True)                       # (1, Cp)
    inv_m = 1.0 / float(M)                                              # padded rows are zero
    mean = s * inv_m
    var = jnp.maximum(ss * inv_m - mean * mean, 0.0)                    # biased batch variance
    inv_std = jax.lax.rsqrt(var + eps)
    g = jnp.pad(gamma.reshape(1, Cout).astype(jnp.float32), ((0, 0), (0, Cp - Cout)))
    b = jnp.pad(beta.reshape(1, Cout).astype(jnp.float32), ((0, 0), (0, Cp - Cout)))
    scale = g * inv_std                                                 # (1, Cp)
    shift = b - mean * scale                                            # (1, Cp)

    # -------- pass 2: streaming normalize + affine (+ReLU); HBM-bandwidth bound --------
    out_flat = pl.pallas_call(
        functools.partial(_bn_apply_kernel, act=act),
        out_shape=jax.ShapeDtypeStruct((M_pad, Cp), jnp.float32),
        grid=(T, Cn),
        in_specs=[pl.BlockSpec((tm, tc), lambda i, j: (i, j)),
                  pl.BlockSpec((1, tc), lambda i, j: (0, j)),
                  pl.BlockSpec((1, tc), lambda i, j: (0, j))],
        out_specs=pl.BlockSpec((tm, tc), lambda i, j: (i, j)),
        compiler_params=pltpu.CompilerParams(
            dimension_semantics=("parallel", "parallel")),
    )(conv_out, scale, shift)

    # NOTE: if ConvBNLayers are chained (EAST head), keep the inter-layer tensor in this
    # (M, Cp) NHWC-flat layout and only transpose to NCHW at the module boundary.
    out = out_flat[:M, :Cout].reshape(N, Hout, Wout, Cout)
    return jnp.transpose(out, (0, 3, 1, 2))


def _reference(x_nchw, weight_oihw, gamma, beta, *, stride, padding, act, eps=1e-5):
    """Pure-JAX f32 reference (same semantics) for correctness check."""
    x_nhwc = jnp.transpose(x_nchw, (0, 2, 3, 1))
    w_hwio = jnp.transpose(weight_oihw, (2, 3, 1, 0))
    y = jax.lax.conv_general_dilated(
        x_nhwc, w_hwio, window_strides=(stride, stride),
        padding=[(padding, padding), (padding, padding)],
        dimension_numbers=("NHWC", "HWIO", "NHWC"),
    )
    mean = jnp.mean(y, axis=(0, 1, 2), keepdims=True)
    var = jnp.mean((y - mean) ** 2, axis=(0, 1, 2), keepdims=True)
    y = (y - mean) * jax.lax.rsqrt(var + eps)
    y = y * gamma.reshape(1, 1, 1, -1) + beta.reshape(1, 1, 1, -1)
    if act == "relu":
        y = jnp.maximum(y, 0.0)
    return jnp.transpose(y, (0, 3, 1, 2))


if __name__ == "__main__":
    # Shapes consistent with ConvBNLayer(in=4, out=8, k=3, stride=1, pad=1, act='relu')
    N, Cin, H, W = 2, 4, 16, 16
    Cout, KH, KW = 8, 3, 3
    stride, padding, act = 1, 1, "relu"

    key = jax.random.PRNGKey(0)
    kx, kw = jax.random.split(key)
    x = jax.random.normal(kx, (N, Cin, H, W), dtype=jnp.float32)
    fan_in = Cin * KH * KW
    weight = jax.random.normal(kw, (Cout, Cin, KH, KW), dtype=jnp.float32) * (2.0 / fan_in) ** 0.5
    gamma = jnp.ones((Cout,), jnp.float32)   # PyTorch BN init
    beta = jnp.zeros((Cout,), jnp.float32)

    out = conv_bn_layer(x, weight, gamma, beta, stride=stride, padding=padding, act=act)
    out = jax.block_until_ready(out)

    ref = _reference(x, weight, gamma, beta, stride=stride, padding=padding, act=act)
    assert out.shape == (N, Cout, H, W)
    # bf16 MXU operands + bf16 conv intermediate (f32 accumulation & f32 BN stats)
    # -> tolerance loosened vs the pure-f32 reference.
    max_err = float(jnp.max(jnp.abs(out - ref)))
    assert jnp.allclose(out, ref, atol=5e-2, rtol=5e-2), f"max abs err = {max_err}"

    print("KERNEL_OK")
</pallas_src>

<mosaic_0001>
module attributes {stable_mosaic.version = 11 : i64} {
  func.func @_conv_stats_kernel(%arg0: i32, %arg1: i32, %arg2: memref<256x128xbf16, #tpu.memory_space<vmem>>, %arg3: memref<128x128xbf16, #tpu.memory_space<vmem>>, %arg4: memref<256x128xbf16, #tpu.memory_space<vmem>>, %arg5: memref<8x128xf32, #tpu.memory_space<vmem>>, %arg6: memref<8x128xf32, #tpu.memory_space<vmem>>) attributes {dimension_semantics = [#tpu.dimension_semantics<parallel>, #tpu.dimension_semantics<parallel>], iteration_bounds = array<i64: 2, 1>, scalar_prefetch = 0 : i64, scratch_operands = 0 : i64, tpu.core_type = #tpu.core_type<tc>, window_params = [{transform_indices = @transform_0, window_bounds = array<i64: 256, 128>}, {transform_indices = @transform_1, window_bounds = array<i64: 128, 128>}, {transform_indices = @transform_2, window_bounds = array<i64: 256, 128>}, {transform_indices = @transform_3, window_bounds = array<i64: 8, 128>}, {transform_indices = @transform_4, window_bounds = array<i64: 8, 128>}]} {
    %c0 = arith.constant 0 : index
    %c0_0 = arith.constant 0 : index
    %0 = vector.load %arg2[%c0, %c0_0] : memref<256x128xbf16, #tpu.memory_space<vmem>>, vector<256x128xbf16>
    %c0_1 = arith.constant 0 : index
    %c0_2 = arith.constant 0 : index
    %1 = vector.load %arg3[%c0_1, %c0_2] : memref<128x128xbf16, #tpu.memory_space<vmem>>, vector<128x128xbf16>
    %cst = arith.constant dense<0.000000e+00> : vector<256x128xf32>
    %2 = tpu.matmul %0, %1, %cst {dimension_numbers = #tpu.dot_dimension_numbers<[1], [0], [0], [1], [0, 0, 1, 1], [], []>} : vector<256x128xbf16>, vector<128x128xbf16>, vector<256x128xf32> -> vector<256x128xf32>
    %3 = arith.truncf %2 : vector<256x128xf32> to vector<256x128xbf16>
    %c0_3 = arith.constant 0 : index
    %c0_4 = arith.constant 0 : index
    %4 = vector.load %arg4[%c0_3, %c0_4] : memref<256x128xbf16, #tpu.memory_space<vmem>>, vector<256x128xbf16>
    tpu.vector_store %arg4[%c0_3, %c0_4], %3 {strides = array<i32>} : memref<256x128xbf16, #tpu.memory_space<vmem>>, vector<256x128xbf16>,
    %cst_5 = arith.constant dense<0.000000e+00> : vector<128xf32>
    %5 = vector.multi_reduction <add>, %2, %cst_5 [0] : vector<256x128xf32> to vector<128xf32>
    %6 = vector.shape_cast %5 : vector<128xf32> to vector<1x128xf32>
    %7 = arith.mulf %2, %2 : vector<256x128xf32>
    %cst_6 = arith.constant dense<0.000000e+00> : vector<128xf32>
    %8 = vector.multi_reduction <add>, %7, %cst_6 [0] : vector<256x128xf32> to vector<128xf32>
    %9 = vector.shape_cast %8 : vector<128xf32> to vector<1x128xf32>
    %10 = tpu.iota {dimensions = array<i32: 0>} : vector<8x128xi32>
    %c0_i32 = arith.constant 0 : i32
    %11 = vector.broadcast %c0_i32 : i32 to vector<8x128xi32>
    %12 = arith.cmpi eq, %10, %11 : vector<8x128xi32>
    %cst_7 = arith.constant 0.000000e+00 : f32
    %13 = vector.shape_cast %6 : vector<1x128xf32> to vector<1x128xf32>
    %14 = vector.broadcast %13 : vector<1x128xf32> to vector<8x128xf32>
    %15 = vector.broadcast %cst_7 : f32 to vector<8x128xf32>
    %16 = arith.select %12, %14, %15 : vector<8x128xi1>, vector<8x128xf32>
    %c0_8 = arith.constant 0 : index
    %c0_9 = arith.constant 0 : index
    %17 = vector.load %arg5[%c0_8, %c0_9] : memref<8x128xf32, #tpu.memory_space<vmem>>, vector<8x128xf32>
    tpu.vector_store %arg5[%c0_8, %c0_9], %16 {strides = array<i32>} : memref<8x128xf32, #tpu.memory_space<vmem>>, vector<8x128xf32>,
    %c0_i32_10 = arith.constant 0 : i32
    %18 = vector.broadcast %c0_i32_10 : i32 to vector<8x128xi32>
    %19 = arith.cmpi eq, %10, %18 : vector<8x128xi32>
    %cst_11 = arith.constant 0.000000e+00 : f32
    %20 = vector.shape_cast %9 : vector<1x128xf32> to vector<1x128xf32>
    %21 = vector.broadcast %20 : vector<1x128xf32> to vector<8x128xf32>
    %22 = vector.broadcast %cst_11 : f32 to vector<8x128xf32>
    %23 = arith.select %19, %21, %22 : vector<8x128xi1>, vector<8x128xf32>
    %c0_12 = arith.constant 0 : index
    %c0_13 = arith.constant 0 : index
    %24 = vector.load %arg6[%c0_12, %c0_13] : memref<8x128xf32, #tpu.memory_space<vmem>>, vector<8x128xf32>
    tpu.vector_store %arg6[%c0_12, %c0_13], %23 {strides = array<i32>} : memref<8x128xf32, #tpu.memory_space<vmem>>, vector<8x128xf32>,
    return
  }
  func.func @transform_0(%arg0: i32, %arg1: i32) -> (i32, i32) {
    %c0_i32 = arith.constant 0 : i32
    %c0_i32_0 = arith.constant 0 : i32
    return %arg0, %c0_i32 : i32, i32
  }
  func.func @transform_1(%arg0: i32, %arg1: i32) -> (i32, i32) {
    %c0_i32 = arith.constant 0 : i32
    %c0_i32_0 = arith.constant 0 : i32
    return %c0_i32, %arg1 : i32, i32
  }
  func.func @transform_2(%arg0: i32, %arg1: i32) -> (i32, i32) {
    %c0_i32 = arith.constant 0 : i32
    return %arg0, %arg1 : i32, i32
  }
  func.func @transform_3(%arg0: i32, %arg1: i32) -> (i32, i32) {
    %c0_i32 = arith.constant 0 : i32
    return %arg0, %arg1 : i32, i32
  }
  func.func @transform_4(%arg0: i32, %arg1: i32) -> (i32, i32) {
    %c0_i32 = arith.constant 0 : i32
    return %arg0, %arg1 : i32, i32
  }
}

</mosaic_0001>

<llo_original>
// kernel: tpu_custom_call.1
$region0: #{tpu_custom_call.1}
  #allocation0 [shape = 'u32[]', space=smem, size = 0x4, offset = 0x4, fixed_abs, tag = 'smem constant byte address 0x4 - core index']
  #allocation1 [shape = 'u32[144,128]{1,0:T(1,128)}', space=vmem, size = 0x12000, scoped, tag = 'internal scratch']
  %s0 = inlined_call_operand.hbm [shape: bf16[512,128], index: 0, kind: input, shape index: {}]
  %s1 = inlined_call_operand.hbm [shape: bf16[128,128], index: 1, kind: input, shape index: {}]
  %s2 = inlined_call_operand.hbm [shape: bf16[512,128], index: 2, kind: output, shape index: {0}]
  %s3 = inlined_call_operand.hbm [shape: f32[16,128], index: 3, kind: output, shape index: {1}]
  %s4 = inlined_call_operand.hbm [shape: f32[16,128], index: 4, kind: output, shape index: {2}]
  %5 = xla_tuple %s2, %s3, %s4
  %s6 = sld [smem:[#allocation0]]
  $region65: #{tpu_custom_call.1} parent=0
    _
  %s8 = ssub.s32 1, %s6
  %s9 = scalar_select 0, %s8, %s6
  $region1: #{tpu_custom_call.1} parent=0
    #allocation2 [shape = 'u8[131072]{0}', space=vmem, size = 0x20000, scoped, tag = 'input window, operand 0']
    #allocation3 [shape = 's32[2]{0}', space=sflag, size = 0x8, scoped, tag = 'scoped memory for tpu_custom_call.1']
    #allocation4 [shape = 's32[2]{0}', space=sflag, size = 0x8, scoped, tag = 'scoped memory for tpu_custom_call.1']
    #allocation5 [shape = 'u8[32768]{0}', space=vmem, size = 0x8000, scoped, tag = 'input window, operand 1, single buffered']
    #allocation6 [shape = 's32[1]{0}', space=sflag, size = 0x4, scoped, tag = 'scoped memory for tpu_custom_call.1']
    #allocation7 [shape = 'u8[131072]{0}', space=vmem, size = 0x20000, scoped, tag = 'output window, operand 0']
    #allocation8 [shape = 'u8[8192]{0}', space=vmem, size = 0x2000, scoped, tag = 'output window, operand 1']
    #allocation9 [shape = 's32[2]{0}', space=sflag, size = 0x8, scoped, tag = 'scoped memory for tpu_custom_call.1']
    #allocation10 [shape = 'u8[8192]{0}', space=vmem, size = 0x2000, scoped, tag = 'output window, operand 2']
    %10 = vsyncpa [#allocation3], 0
    %s11 = scalar_lea.sflag [#allocation3], 1
    %12 = vsyncpa %s11, 0
    %13 = vsyncpa [#allocation6], 0
    %14 = vsyncpa [#allocation4], 0
    %s15 = scalar_lea.sflag [#allocation4], 1
    %16 = vsyncpa %s15, 0
    %17 = vsyncpa [#allocation9], 0
    %s18 = scalar_lea.sflag [#allocation9], 1
    %19 = vsyncpa %s18, 0
    loop: start=0, step=1, limit=4
    $region2: #{tpu_custom_call.1} parent=1 // loop_pre_header
      _
    $region3: #{tpu_custom_call.1} parent=1 // loop_header
      %s21 = sphi 0, %s25
      %p22 = scmp.ge.s32.totalorder %s21, 4
      %s28 = sphi 0, %s40
      %s29 = sphi 0, %s36
      %s30 = sphi 0, %s28
      %s31 = sphi 0, %s29
      %s32 = sphi 0, %s30
      %s33 = sphi 0, %s31
      %s43 = sphi 0, %s45
      %s46 = sphi 0, %s43
      %s47 = sphi 0, %s46
      %s63 = sphi 0, %s47
      %s69 = sphi 0, %s71
      %s72 = sphi 0, %s69
      %s73 = sphi 0, %s72
      %s89 = sphi 0, %s73
      %s97 = sphi 0, %s99
      %s100 = sphi 0, %s97
      %s101 = sphi 0, %s100
      %s117 = sphi 0, %s101
      %s125 = sphi 0, %s127
      %s128 = sphi 0, %s125
      %s129 = sphi 0, %s128
      %s145 = sphi 0, %s129
      %s153 = sphi 0, %s155
      %s156 = sphi 0, %s153
      %s157 = sphi 0, %s156
      %s173 = sphi 0, %s157
    $region4: #{tpu_custom_call.1} parent=1 // loop_header_branch
      %24 = sbr.rel (%p22) target = $region8
    $region5: #{tpu_custom_call.1} parent=1 // loop_body
      %s26 = ssub.s32 %s21, 1
      %s27 = ssub.s32 %s21, 2
      %s34 = sadd.s32 1, %s29
      %p35 = scmp.ge.s32.totalorder %s34, 1
      %s36 = scalar_select %p35, 0, %s34
      %s37 = sadd.s32 1, %s28
      %s38 = scalar_select %p35, %s37, %s28
      %p39 = scmp.ge.s32.totalorder %s38, 2
      %s40 = scalar_select %p39, 0, %s38
      %s41 = ssub.s32 %s28, %s40
      %p42 = scmp.eq.s32.totalorder %s41, 0
      %s44 = sadd.s32 %s43, 1
      %s45 = scalar_select %p42, %s43, %s44
      %p48 = pneg %p42
      %p49 = scmp.eq.s32.totalorder %s21, 1
      %p50 = por %p48, %p49
      %p51 = scmp.ne.s32.totalorder %s43, %s46
      %p52 = scmp.eq.s32.totalorder %s21, 0
      %p53 = por %p51, %p52
      %p54 = scmp.ne.s32.totalorder %s43, %s46
      %p55 = scmp.eq.s32.totalorder %s26, 1
      %p56 = por %p54, %p55
      %p57 = scmp.ne.s32.totalorder %s46, %s47
      %p58 = scmp.eq.s32.totalorder %s26, 0
      %p59 = por %p57, %p58
      %p60 = scmp.ne.s32.totalorder %s46, %s47
      %p61 = scmp.eq.s32.totalorder %s27, 1
      %p62 = por %p60, %p61
      %p64 = scmp.ne.s32.totalorder %s47, %s63
      %p65 = scmp.eq.s32.totalorder %s27, 0
      %p66 = por %p64, %p65
      %s67 = ssub.s32 %s29, %s36
      %p68 = scmp.eq.s32.totalorder %s67, 0
      %s70 = sadd.s32 %s69, 1
      %s71 = scalar_select %p68, %s69, %s70
      %p74 = pneg %p68
      %p75 = scmp.eq.s32.totalorder %s21, 1
      %p76 = por %p74, %p75
      %p77 = scmp.ne.s32.totalorder %s69, %s72
      %p78 = scmp.eq.s32.totalorder %s21, 0
      %p79 = por %p77, %p78
      %p80 = scmp.ne.s32.totalorder %s69, %s72
      %p81 = scmp.eq.s32.totalorder %s26, 1
      %p82 = por %p80, %p81
      %p83 = scmp.ne.s32.totalorder %s72, %s73
      %p84 = scmp.eq.s32.totalorder %s26, 0
      %p85 = por %p83, %p84
      %p86 = scmp.ne.s32.totalorder %s72, %s73
      %p87 = scmp.eq.s32.totalorder %s27, 1
      %p88 = por %p86, %p87
      %p90 = scmp.ne.s32.totalorder %s73, %s89
      %p91 = scmp.eq.s32.totalorder %s27, 0
      %p92 = por %p90, %p91
      %s93 = ssub.s32 %s28, %s40
      %s94 = ssub.s32 %s29, %s36
      %s95 = sor.u32 %s93, %s94
      %p96 = scmp.eq.s32.totalorder %s95, 0
      %s98 = sadd.s32 %s97, 1
      %s99 = scalar_select %p96, %s97, %s98
      %p102 = pneg %p96
      %p103 = scmp.eq.s32.totalorder %s21, 1
      %p104 = por %p102, %p103
      %p105 = scmp.ne.s32.totalorder %s97, %s100
      %p106 = scmp.eq.s32.totalorder %s21, 0
      %p107 = por %p105, %p106
      %p108 = scmp.ne.s32.totalorder %s97, %s100
      %p109 = scmp.eq.s32.totalorder %s26, 1
      %p110 = por %p108, %p109
      %p111 = scmp.ne.s32.totalorder %s100, %s101
      %p112 = scmp.eq.s32.totalorder %s26, 0
      %p113 = por %p111, %p112
      %p114 = scmp.ne.s32.totalorder %s100, %s101
      %p115 = scmp.eq.s32.totalorder %s27, 1
      %p116 = por %p114, %p115
      %p118 = scmp.ne.s32.totalorder %s101, %s117
      %p119 = scmp.eq.s32.totalorder %s27, 0
      %p120 = por %p118, %p119
      %s121 = ssub.s32 %s28, %s40
      %s122 = ssub.s32 %s29, %s36
      %s123 = sor.u32 %s121, %s122
      %p124 = scmp.eq.s32.totalorder %s123, 0
      %s126 = sadd.s32 %s125, 1
      %s127 = scalar_select %p124, %s125, %s126
      %p130 = pneg %p124
      %p131 = scmp.eq.s32.totalorder %s21, 1
      %p132 = por %p130, %p131
      %p133 = scmp.ne.s32.totalorder %s125, %s128
      %p134 = scmp.eq.s32.totalorder %s21, 0
      %p135 = por %p133, %p134
      %p136 = scmp.ne.s32.totalorder %s125, %s128
      %p137 = scmp.eq.s32.totalorder %s26, 1
      %p138 = por %p136, %p137
      %p139 = scmp.ne.s32.totalorder %s128, %s129
      %p140 = scmp.eq.s32.totalorder %s26, 0
      %p141 = por %p139, %p140
      %p142 = scmp.ne.s32.totalorder %s128, %s129
      %p143 = scmp.eq.s32.totalorder %s27, 1
      %p144 = por %p142, %p143
      %p146 = scmp.ne.s32.totalorder %s129, %s145
      %p147 = scmp.eq.s32.totalorder %s27, 0
      %p148 = por %p146, %p147
      %s149 = ssub.s32 %s28, %s40
      %s150 = ssub.s32 %s29, %s36
      %s151 = sor.u32 %s149, %s150
      %p152 = scmp.eq.s32.totalorder %s151, 0
      %s154 = sadd.s32 %s153, 1
      %s155 = scalar_select %p152, %s153, %s154
      %p158 = pneg %p152
      %p159 = scmp.eq.s32.totalorder %s21, 1
      %p160 = por %p158, %p159
      %p161 = scmp.ne.s32.totalorder %s153, %s156
      %p162 = scmp.eq.s32.totalorder %s21, 0
      %p163 = por %p161, %p162
      %p164 = scmp.ne.s32.totalorder %s153, %s156
      %p165 = scmp.eq.s32.totalorder %s26, 1
      %p166 = por %p164, %p165
      %p167 = scmp.ne.s32.totalorder %s156, %s157
      %p168 = scmp.eq.s32.totalorder %s26, 0
      %p169 = por %p167, %p168
      %p170 = scmp.ne.s32.totalorder %s156, %s157
      %p171 = scmp.eq.s32.totalorder %s27, 1
      %p172 = por %p170, %p171
      %p174 = scmp.ne.s32.totalorder %s157, %s173
      %p175 = scmp.eq.s32.totalorder %s27, 0
      %p176 = por %p174, %p175
      %p177 = scmp.le.s32.totalorder 1, %s21
      %p178 = scmp.lt.s32.totalorder %s21, 3
      %p179 = pnand %p177, %p178
      %p180 = pneg %p179
      // Predicated region
      $region9: #{tpu_custom_call.1} parent=5 // pred_check
        _
      $region10: #{tpu_custom_call.1} parent=5 // pred_check_branch
        %182 = sbr.rel (%p179) target = $region12
      $region11: #{tpu_custom_call.1} parent=5 // pred_region
        %s183 = ssub.s32 %s21, 1
        // Predicated region
        $region13: #{tpu_custom_call.1} parent=11 // pred_check
          %p184 = pneg %p85
        $region14: #{tpu_custom_call.1} parent=11 // pred_check_branch
          %186 = sbr.rel (%p184) target = $region16
        $region15: #{tpu_custom_call.1} parent=11 // pred_region
          %s188 = ssub.s32 1024, 1024
          %189 = vsyncadd [#allocation6], %s188
          %s190 = smul.addr %s31, 64
          %s191 = scalar_lea.hbm %s1, %s190
          %s192 = sshll.u32 [#allocation5], 4
          %s193 = int_to_ptr.vmem [resolvable:$true] %s192
          %198 = dma.hbm_to_vmem [thread:$0]  %s191, 1024, %s193, [#allocation6], 64, 64, 4
        $region16: #{tpu_custom_call.1} parent=11 // pred_fallthru
          _
      $region12: #{tpu_custom_call.1} parent=5 // pred_fallthru
        _
      %p199 = scmp.lt.s32.totalorder %s21, 2
      // Predicated region
      $region17: #{tpu_custom_call.1} parent=5 // pred_check
        %p200 = pneg %p199
      $region18: #{tpu_custom_call.1} parent=5 // pred_check_branch
        %202 = sbr.rel (%p200) target = $region20
      $region19: #{tpu_custom_call.1} parent=5 // pred_region
        // Predicated region
        $region21: #{tpu_custom_call.1} parent=19 // pred_check
          %p203 = pneg %p53
        $region22: #{tpu_custom_call.1} parent=19 // pred_check_branch
          %205 = sbr.rel (%p203) target = $region24
        $region23: #{tpu_custom_call.1} parent=19 // pred_region
          %s206 = sand.u32 %s43, 1
          %s207 = scalar_lea.sflag [#allocation3], %s206
          %s208 = sand.u32 %s43, 1
          %s209 = smul.addr %s208, 128
          %s210 = scalar_lea.vmem [#allocation2], %s209
          %s211 = smul.u32 32, %s28
          %s213 = ssub.s32 2048, 2048
          %214 = vsyncadd %s207, %s213
          %s215 = smul.addr %s211, 64
          %s216 = scalar_lea.hbm %s0, %s215
          %s217 = sshll.u32 %s210, 4
          %s218 = int_to_ptr.vmem [resolvable:$true] %s217
          %223 = dma.hbm_to_vmem [thread:$0]  %s216, 2048, %s218, %s207, 64, 64, 4
        $region24: #{tpu_custom_call.1} parent=19 // pred_fallthru
          _
      $region20: #{tpu_custom_call.1} parent=5 // pred_fallthru
        _
      %p224 = scmp.le.s32.totalorder 1, %s21
      %p225 = scmp.lt.s32.totalorder %s21, 3
      %p226 = pnand %p224, %p225
      %p227 = pneg %p226
      // Predicated region
      $region25: #{tpu_custom_call.1} parent=5 // pred_check
        _
      $region26: #{tpu_custom_call.1} parent=5 // pred_check_branch
        %229 = sbr.rel (%p226) target = $region28
      $region27: #{tpu_custom_call.1} parent=5 // pred_region
        %s230 = ssub.s32 %s21, 1
        %s231 = sand.u32 %s46, 1
        %s232 = scalar_lea.sflag [#allocation3], %s231
        %s233 = sand.u32 %s46, 1
        %s234 = smul.addr %s233, 128
        %s235 = scalar_lea.vmem [#allocation2], %s234
        // Predicated region
        $region29: #{tpu_custom_call.1} parent=27 // pred_check
          %p236 = pneg %p59
        $region30: #{tpu_custom_call.1} parent=27 // pred_check_branch
          %238 = sbr.rel (%p236) target = $region32
        $region31: #{tpu_custom_call.1} parent=27 // pred_region
          %239 = dma.done %s232, 2048
        $region32: #{tpu_custom_call.1} parent=27 // pred_fallthru
          _
        // Predicated region
        $region33: #{tpu_custom_call.1} parent=27 // pred_check
          %p240 = pneg %p85
        $region34: #{tpu_custom_call.1} parent=27 // pred_check_branch
          %242 = sbr.rel (%p240) target = $region36
        $region35: #{tpu_custom_call.1} parent=27 // pred_region
          %243 = dma.done [#allocation6], 1024
        $region36: #{tpu_custom_call.1} parent=27 // pred_fallthru
          _
        %s244 = sand.u32 %s46, 1
        %s245 = scalar_lea.sflag [#allocation3], %s244
        %s246 = sand.u32 %s46, 1
        %s247 = smul.addr %s246, 128
        %s248 = scalar_lea.vmem [#allocation2], %s247
        %p249 = pneg %p59
        %p250 = pneg %p56
        %p251 = pneg %p85
        %p252 = pneg %p82
        %p253 = pneg %p113
        %p254 = pneg %p110
        %s255 = sand.u32 %s100, 1
        %s256 = scalar_lea.sflag [#allocation4], %s255
        %s257 = sand.u32 %s100, 1
        %s258 = smul.addr %s257, 128
        %s259 = scalar_lea.vmem [#allocation7], %s258
        %p260 = pneg %p141
        %p261 = pneg %p138
        %s262 = sand.u32 %s26, 1
        %s263 = scalar_lea.sflag [#allocation9], %s262
        %s264 = sand.u32 %s128, 1
        %s265 = smul.addr %s264, 8
        %s266 = scalar_lea.vmem [#allocation8], %s265
        %p267 = pneg %p169
        %p268 = pneg %p166
        %s269 = sand.u32 %s26, 1
        %s270 = scalar_lea.sflag [#allocation9], %s269
        %s271 = sand.u32 %s156, 1
        %s272 = smul.addr %s271, 8
        %s273 = scalar_lea.vmem [#allocation10], %s272
        %s274 = smul.u32 32, %s30
        %s275 = smul.u32 32, %s30
        %v277 = vld [vmem:[%s235] sm:$0xf]
        %v278 = vld [vmem:[%s235 + $0x4] sm:$0xf]
        %v279 = vld [vmem:[%s235 + $0x8] sm:$0xf]
        %v280 = vld [vmem:[%s235 + $0xc] sm:$0xf]
        %v281 = vld [vmem:[%s235 + $0x10] sm:$0xf]
        %v282 = vld [vmem:[%s235 + $0x14] sm:$0xf]
        %v283 = vld [vmem:[%s235 + $0x18] sm:$0xf]
        %v284 = vld [vmem:[%s235 + $0x1c] sm:$0xf]
        %v285 = vld [vmem:[%s235 + $0x20] sm:$0xf]
        %v286 = vld [vmem:[%s235 + $0x24] sm:$0xf]
        %v287 = vld [vmem:[%s235 + $0x28] sm:$0xf]
        %v288 = vld [vmem:[%s235 + $0x2c] sm:$0xf]
        %v289 = vld [vmem:[%s235 + $0x30] sm:$0xf]
        %v290 = vld [vmem:[%s235 + $0x34] sm:$0xf]
        %v291 = vld [vmem:[%s235 + $0x38] sm:$0xf]
        %v292 = vld [vmem:[%s235 + $0x3c] sm:$0xf]
        %v293 = vld [vmem:[%s235 + $0x40] sm:$0xf]
        %v294 = vld [vmem:[%s235 + $0x44] sm:$0xf]
        %v295 = vld [vmem:[%s235 + $0x48] sm:$0xf]
        %v296 = vld [vmem:[%s235 + $0x4c] sm:$0xf]
        %v297 = vld [vmem:[%s235 + $0x50] sm:$0xf]
        %v298 = vld [vmem:[%s235 + $0x54] sm:$0xf]
        %v299 = vld [vmem:[%s235 + $0x58] sm:$0xf]
        %v300 = vld [vmem:[%s235 + $0x5c] sm:$0xf]
        %v301 = vld [vmem:[%s235 + $0x60] sm:$0xf]
        %v302 = vld [vmem:[%s235 + $0x64] sm:$0xf]
        %v303 = vld [vmem:[%s235 + $0x68] sm:$0xf]
        %v304 = vld [vmem:[%s235 + $0x6c] sm:$0xf]
        %v305 = vld [vmem:[%s235 + $0x70] sm:$0xf]
        %v306 = vld [vmem:[%s235 + $0x74] sm:$0xf]
        %v307 = vld [vmem:[%s235 + $0x78] sm:$0xf]
        %v308 = vld [vmem:[%s235 + $0x7c] sm:$0xf]
        %v309 = vld [vmem:[#allocation5] sm:$0xf]
        %v310 = vld [vmem:[#allocation5 + $0x4] sm:$0xf]
        %v311 = vld [vmem:[#allocation5 + $0x8] sm:$0xf]
        %v312 = vld [vmem:[#allocation5 + $0xc] sm:$0xf]
        %v313 = vld [vmem:[#allocation5 + $0x10] sm:$0xf]
        %v314 = vld [vmem:[#allocation5 + $0x14] sm:$0xf]
        %v315 = vld [vmem:[#allocation5 + $0x18] sm:$0xf]
        %v316 = vld [vmem:[#allocation5 + $0x1c] sm:$0xf]
        %v317 = vld [vmem:[#allocation5 + $0x20] sm:$0xf]
        %v318 = vld [vmem:[#allocation5 + $0x24] sm:$0xf]
        %v319 = vld [vmem:[#allocation5 + $0x28] sm:$0xf]
        %v320 = vld [vmem:[#allocation5 + $0x2c] sm:$0xf]
        %v321 = vld [vmem:[#allocation5 + $0x30] sm:$0xf]
        %v322 = vld [vmem:[#allocation5 + $0x34] sm:$0xf]
        %v323 = vld [vmem:[#allocation5 + $0x38] sm:$0xf]
        %v324 = vld [vmem:[#allocation5 + $0x3c] sm:$0xf]
        %v357 = vunpack.c.l.b16 %v277
        %v358 = vunpack.c.l.b16 %v278
        %v359 = vunpack.c.l.b16 %v279
        %v360 = vunpack.c.l.b16 %v280
        %v361 = vunpack.c.l.b16 %v281
        %v362 = vunpack.c.l.b16 %v282
        %v363 = vunpack.c.l.b16 %v283
        %v364 = vunpack.c.l.b16 %v284
        %v365 = vunpack.c.l.b16 %v285
        %v366 = vunpack.c.l.b16 %v286
        %v367 = vunpack.c.l.b16 %v287
        %v368 = vunpack.c.l.b16 %v288
        %v369 = vunpack.c.l.b16 %v289
        %v370 = vunpack.c.l.b16 %v290
        %v371 = vunpack.c.l.b16 %v291
        %v372 = vunpack.c.l.b16 %v292
        %v373 = vunpack.c.l.b16 %v293
        %v374 = vunpack.c.l.b16 %v294
        %v375 = vunpack.c.l.b16 %v295
        %v376 = vunpack.c.l.b16 %v296
        %v377 = vunpack.c.l.b16 %v297
        %v378 = vunpack.c.l.b16 %v298
        %v379 = vunpack.c.l.b16 %v299
        %v380 = vunpack.c.l.b16 %v300
        %v381 = vunpack.c.l.b16 %v301
        %v382 = vunpack.c.l.b16 %v302
        %v383 = vunpack.c.l.b16 %v303
        %v384 = vunpack.c.l.b16 %v304
        %v385 = vunpack.c.l.b16 %v305
        %v386 = vunpack.c.l.b16 %v306
        %v387 = vunpack.c.l.b16 %v307
        %v388 = vunpack.c.l.b16 %v308
        %v389 = vpack.c.b16 %v358, %v357
        %v390 = vpack.c.b16 %v360, %v359
        %v391 = vpack.c.b16 %v362, %v361
        %v392 = vpack.c.b16 %v364, %v363
        %v393 = vpack.c.b16 %v366, %v365
        %v394 = vpack.c.b16 %v368, %v367
        %v395 = vpack.c.b16 %v370, %v369
        %v396 = vpack.c.b16 %v372, %v371
        %v397 = vpack.c.b16 %v374, %v373
        %v398 = vpack.c.b16 %v376, %v375
        %v399 = vpack.c.b16 %v378, %v377
        %v400 = vpack.c.b16 %v380, %v379
        %v401 = vpack.c.b16 %v382, %v381
        %v402 = vpack.c.b16 %v384, %v383
        %v403 = vpack.c.b16 %v386, %v385
        %v404 = vpack.c.b16 %v388, %v387
        %v437 = vunpack.c.l.b16 %v309
        %v438 = vunpack.c.l.b16 %v310
        %v439 = vunpack.c.l.b16 %v311
        %v440 = vunpack.c.l.b16 %v312
        %v441 = vunpack.c.l.b16 %v313
        %v442 = vunpack.c.l.b16 %v314
        %v443 = vunpack.c.l.b16 %v315
        %v444 = vunpack.c.l.b16 %v316
        %v445 = vunpack.c.l.b16 %v317
        %v446 = vunpack.c.l.b16 %v318
        %v447 = vunpack.c.l.b16 %v319
        %v448 = vunpack.c.l.b16 %v320
        %v449 = vunpack.c.l.b16 %v321
        %v450 = vunpack.c.l.b16 %v322
        %v451 = vunpack.c.l.b16 %v323
        %v452 = vunpack.c.l.b16 %v324
        %v453 = vpack.c.b16 %v438, %v437
        %v454 = vpack.c.b16 %v440, %v439
        %v455 = vpack.c.b16 %v442, %v441
        %v456 = vpack.c.b16 %v444, %v443
        %v457 = vpack.c.b16 %v446, %v445
        %v458 = vpack.c.b16 %v448, %v447
        %v459 = vpack.c.b16 %v450, %v449
        %v460 = vpack.c.b16 %v452, %v451
        %469 = vmatprep.subr.bf16.mxu0 0
        %470 = vmatpush1.bf16.msra.mxu0 %v453
        %471 = vmatprep.subr.bf16.mxu0 0
        %472 = vmatpush1.bf16.msra.mxu0 %v454
        %473 = vmatprep.subr.bf16.mxu0 0
        %474 = vmatpush1.bf16.msra.mxu0 %v455
        %475 = vmatprep.subr.bf16.mxu0 0
        %476 = vmatpush1.bf16.msra.mxu0 %v456
        %477 = vmatprep.subr.bf16.mxu0 0
        %478 = vmatpush1.bf16.msra.mxu0 %v457
        %479 = vmatprep.subr.bf16.mxu0 0
        %480 = vmatpush1.bf16.msra.mxu0 %v458
        %481 = vmatprep.subr.bf16.mxu0 0
        %482 = vmatpush1.bf16.msra.mxu0 %v459
        %483 = vmatprep.subr.bf16.mxu0 0
        %484 = vmatpush1.bf16.msra.mxu0 %v460
        %485 = vmatprep.subr.bf16.mxu0 0
        %486 = vmatpush1.bf16.msra.mxu0 0
        %487 = vmatprep.subr.bf16.mxu0 0
        %488 = vmatpush1.bf16.msra.mxu0 0
        %489 = vmatprep.subr.bf16.mxu0 0
        %490 = vmatpush1.bf16.msra.mxu0 0
        %491 = vmatprep.subr.bf16.mxu0 0
        %492 = vmatpush1.bf16.msra.mxu0 0
        %493 = vmatprep.subr.bf16.mxu0 0
        %494 = vmatpush1.bf16.msra.mxu0 0
        %495 = vmatprep.subr.bf16.mxu0 0
        %496 = vmatpush1.bf16.msra.mxu0 0
        %497 = vmatprep.subr.bf16.mxu0 0
        %498 = vmatpush1.bf16.msra.mxu0 0
        %499 = vmatprep.subr.bf16.mxu0 0
        %500 = vmatpush1.bf16.msra.mxu0 0
        %501 = vmatprep.mubr.bf16.mxu0 0
        %502 = vmatmul.mubr.bf16.gmra.mrb[0].mxu0 %v389
        %v503 = vpop.f32.mrb[0].mxu0
        %v504 = vadd.f32 0.0, %v503
        %v505 = vpop.f32.mrb[0].mxu0
        %v506 = vpop.f32.mrb[0].mxu0
        %v507 = vadd.f32 0.0, %v506
        %v508 = vpop.f32.mrb[0].mxu0
        %509 = vmatprep.mubr.bf16.mxu0 0
        %510 = vmatmul.mubr.bf16.gmra.mrb[0].mxu0 %v390
        %v511 = vpop.f32.mrb[0].mxu0
        %v512 = vadd.f32 0.0, %v511
        %v513 = vpop.f32.mrb[0].mxu0
        %v514 = vpop.f32.mrb[0].mxu0
        %v515 = vadd.f32 0.0, %v514
        %v516 = vpop.f32.mrb[0].mxu0
        %517 = vmatprep.mubr.bf16.mxu0 0
        %518 = vmatmul.mubr.bf16.gmra.mrb[0].mxu0 %v391
        %v519 = vpop.f32.mrb[0].mxu0
        %v520 = vadd.f32 0.0, %v519
        %v521 = vpop.f32.mrb[0].mxu0
        %v522 = vpop.f32.mrb[0].mxu0
        %v523 = vadd.f32 0.0, %v522
        %v524 = vpop.f32.mrb[0].mxu0
        %525 = vmatprep.mubr.bf16.mxu0 0
        %526 = vmatmul.mubr.bf16.gmra.mrb[0].mxu0 %v392
        %v527 = vpop.f32.mrb[0].mxu0
        %v528 = vadd.f32 0.0, %v527
        %v529 = vpop.f32.mrb[0].mxu0
        %v530 = vpop.f32.mrb[0].mxu0
        %v531 = vadd.f32 0.0, %v530
        %v532 = vpop.f32.mrb[0].mxu0
        %533 = vmatprep.mubr.bf16.mxu0 0
        %534 = vmatmul.mubr.bf16.gmra.mrb[0].mxu0 %v393
        %v535 = vpop.f32.mrb[0].mxu0
        %v536 = vadd.f32 0.0, %v535
        %v537 = vpop.f32.mrb[0].mxu0
        %v538 = vpop.f32.mrb[0].mxu0
        %v539 = vadd.f32 0.0, %v538
        %v540 = vpop.f32.mrb[0].mxu0
        %541 = vmatprep.mubr.bf16.mxu0 0
        %542 = vmatmul.mubr.bf16.gmra.mrb[0].mxu0 %v394
        %v543 = vpop.f32.mrb[0].mxu0
        %v544 = vadd.f32 0.0, %v543
        %v545 = vpop.f32.mrb[0].mxu0
        %v546 = vpop.f32.mrb[0].mxu0
        %v547 = vadd.f32 0.0, %v546
        %v548 = vpop.f32.mrb[0].mxu0
        %549 = vmatprep.mubr.bf16.mxu0 0
        %550 = vmatmul.mubr.bf16.gmra.mrb[0].mxu0 %v395
        %v551 = vpop.f32.mrb[0].mxu0
        %v552 = vadd.f32 0.0, %v551
        %v553 = vpop.f32.mrb[0].mxu0
        %v554 = vpop.f32.mrb[0].mxu0
        %v555 = vadd.f32 0.0, %v554
        %v556 = vpop.f32.mrb[0].mxu0
        %557 = vmatprep.mubr.bf16.mxu0 0
        %558 = vmatmul.mubr.bf16.gmra.mrb[0].mxu0 %v396
        %v559 = vpop.f32.mrb[0].mxu0
        %v560 = vadd.f32 0.0, %v559
        %v561 = vpop.f32.mrb[0].mxu0
        %v562 = vpop.f32.mrb[0].mxu0
        %v563 = vadd.f32 0.0, %v562
        %v564 = vpop.f32.mrb[0].mxu0
        %565 = vmatprep.mubr.bf16.mxu0 0
        %566 = vmatmul.mubr.bf16.gmra.mrb[0].mxu0 %v397
        %v567 = vpop.f32.mrb[0].mxu0
        %v568 = vadd.f32 0.0, %v567
        %v569 = vpop.f32.mrb[0].mxu0
        %v570 = vpop.f32.mrb[0].mxu0
        %v571 = vadd.f32 0.0, %v570
        %v572 = vpop.f32.mrb[0].mxu0
        %573 = vmatprep.mubr.bf16.mxu0 0
        %574 = vmatmul.mubr.bf16.gmra.mrb[0].mxu0 %v398
        %v575 = vpop.f32.mrb[0].mxu0
        %v576 = vadd.f32 0.0, %v575
        %v577 = vpop.f32.mrb[0].mxu0
        %v578 = vpop.f32.mrb[0].mxu0
        %v579 = vadd.f32 0.0, %v578
        %v580 = vpop.f32.mrb[0].mxu0
        %581 = vmatprep.mubr.bf16.mxu0 0
        %582 = vmatmul.mubr.bf16.gmra.mrb[0].mxu0 %v399
        %v583 = vpop.f32.mrb[0].mxu0
        %v584 = vadd.f32 0.0, %v583
        %v585 = vpop.f32.mrb[0].mxu0
        %v586 = vpop.f32.mrb[0].mxu0
        %v587 = vadd.f32 0.0, %v586
        %v588 = vpop.f32.mrb[0].mxu0
        %589 = vmatprep.mubr.bf16.mxu0 0
        %590 = vmatmul.mubr.bf16.gmra.mrb[0].mxu0 %v400
        %v591 = vpop.f32.mrb[0].mxu0
        %v592 = vadd.f32 0.0, %v591
        %v593 = vpop.f32.mrb[0].mxu0
        %v594 = vpop.f32.mrb[0].mxu0
        %v595 = vadd.f32 0.0, %v594
        %v596 = vpop.f32.mrb[0].mxu0
        %597 = vmatprep.mubr.bf16.mxu0 0
        %598 = vmatmul.mubr.bf16.gmra.mrb[0].mxu0 %v401
        %v599 = vpop.f32.mrb[0].mxu0
        %v600 = vadd.f32 0.0, %v599
        %v601 = vpop.f32.mrb[0].mxu0
        %v602 = vpop.f32.mrb[0].mxu0
        %v603 = vadd.f32 0.0, %v602
        %v604 = vpop.f32.mrb[0].mxu0
        %605 = vmatprep.mubr.bf16.mxu0 0
        %606 = vmatmul.mubr.bf16.gmra.mrb[0].mxu0 %v402
        %v607 = vpop.f32.mrb[0].mxu0
        %v608 = vadd.f32 0.0, %v607
        %v609 = vpop.f32.mrb[0].mxu0
        %v610 = vpop.f32.mrb[0].mxu0
        %v611 = vadd.f32 0.0, %v610
        %v612 = vpop.f32.mrb[0].mxu0
        %613 = vmatprep.mubr.bf16.mxu0 0
        %614 = vmatmul.mubr.bf16.gmra.mrb[0].mxu0 %v403
        %v615 = vpop.f32.mrb[0].mxu0
        %v616 = vadd.f32 0.0, %v615
        %v617 = vpop.f32.mrb[0].mxu0
        %v618 = vpop.f32.mrb[0].mxu0
        %v619 = vadd.f32 0.0, %v618
        %v620 = vpop.f32.mrb[0].mxu0
        %621 = vmatprep.mubr.bf16.mxu0 0
        %622 = vmatmul.mubr.bf16.gmra.mrb[0].mxu0 %v404
        %v623 = vpop.f32.mrb[0].mxu0
        %v624 = vadd.f32 0.0, %v623
        %v625 = vpop.f32.mrb[0].mxu0
        %v626 = vpop.f32.mrb[0].mxu0
        %v627 = vadd.f32 0.0, %v626
        %v628 = vpop.f32.mrb[0].mxu0
        %629 = vdwg.mxu0
        %v630 = vpack.c.bf16 %v507, %v504
        %v631 = vpack.c.bf16 %v515, %v512
        %v632 = vpack.c.bf16 %v523, %v520
        %v633 = vpack.c.bf16 %v531, %v528
        %v634 = vpack.c.bf16 %v539, %v536
        %v635 = vpack.c.bf16 %v547, %v544
        %v636 = vpack.c.bf16 %v555, %v552
        %v637 = vpack.c.bf16 %v563, %v560
        %v638 = vpack.c.bf16 %v571, %v568
        %v639 = vpack.c.bf16 %v579, %v576
        %v640 = vpack.c.bf16 %v587, %v584
        %v641 = vpack.c.bf16 %v595, %v592
        %v642 = vpack.c.bf16 %v603, %v600
        %v643 = vpack.c.bf16 %v611, %v608
        %v644 = vpack.c.bf16 %v619, %v616
        %v645 = vpack.c.bf16 %v627, %v624
        %v662 = vunpack.c.l.b16 %v630
        %v663 = vunpack.c.h.b16 %v630
        %v664 = vunpack.c.l.b16 %v631
        %v665 = vunpack.c.h.b16 %v631
        %v666 = vunpack.c.l.b16 %v632
        %v667 = vunpack.c.h.b16 %v632
        %v668 = vunpack.c.l.b16 %v633
        %v669 = vunpack.c.h.b16 %v633
        %v670 = vunpack.c.l.b16 %v634
        %v671 = vunpack.c.h.b16 %v634
        %v672 = vunpack.c.l.b16 %v635
        %v673 = vunpack.c.h.b16 %v635
        %v674 = vunpack.c.l.b16 %v636
        %v675 = vunpack.c.h.b16 %v636
        %v676 = vunpack.c.l.b16 %v637
        %v677 = vunpack.c.h.b16 %v637
        %v678 = vunpack.c.l.b16 %v638
        %v679 = vunpack.c.h.b16 %v638
        %v680 = vunpack.c.l.b16 %v639
        %v681 = vunpack.c.h.b16 %v639
        %v682 = vunpack.c.l.b16 %v640
        %v683 = vunpack.c.h.b16 %v640
        %v684 = vunpack.c.l.b16 %v641
        %v685 = vunpack.c.h.b16 %v641
        %v686 = vunpack.c.l.b16 %v642
        %v687 = vunpack.c.h.b16 %v642
        %v688 = vunpack.c.l.b16 %v643
        %v689 = vunpack.c.h.b16 %v643
        %v690 = vunpack.c.l.b16 %v644
        %v691 = vunpack.c.h.b16 %v644
        %v692 = vunpack.c.l.b16 %v645
        %v693 = vunpack.c.h.b16 %v645
        %v694 = vpack.c.b16 %v662, %v662
        %v695 = vpack.c.b16 %v663, %v663
        %v696 = vpack.c.b16 %v664, %v664
        %v697 = vpack.c.b16 %v665, %v665
        %v698 = vpack.c.b16 %v666, %v666
        %v699 = vpack.c.b16 %v667, %v667
        %v700 = vpack.c.b16 %v668, %v668
        %v701 = vpack.c.b16 %v669, %v669
        %v702 = vpack.c.b16 %v670, %v670
        %v703 = vpack.c.b16 %v671, %v671
        %v704 = vpack.c.b16 %v672, %v672
        %v705 = vpack.c.b16 %v673, %v673
        %v706 = vpack.c.b16 %v674, %v674
        %v707 = vpack.c.b16 %v675, %v675
        %v708 = vpack.c.b16 %v676, %v676
        %v709 = vpack.c.b16 %v677, %v677
        %v710 = vpack.c.b16 %v678, %v678
        %v711 = vpack.c.b16 %v679, %v679
        %v712 = vpack.c.b16 %v680, %v680
        %v713 = vpack.c.b16 %v681, %v681
        %v714 = vpack.c.b16 %v682, %v682
        %v715 = vpack.c.b16 %v683, %v683
        %v716 = vpack.c.b16 %v684, %v684
        %v717 = vpack.c.b16 %v685, %v685
        %v718 = vpack.c.b16 %v686, %v686
        %v719 = vpack.c.b16 %v687, %v687
        %v720 = vpack.c.b16 %v688, %v688
        %v721 = vpack.c.b16 %v689, %v689
        %v722 = vpack.c.b16 %v690, %v690
        %v723 = vpack.c.b16 %v691, %v691
        %v724 = vpack.c.b16 %v692, %v692
        %v725 = vpack.c.b16 %v693, %v693
        %758 = vst [vmem:[%s259] sm:$0xf] %v694
        %759 = vst [vmem:[%s259 + $0x4] sm:$0xf] %v695
        %760 = vst [vmem:[%s259 + $0x8] sm:$0xf] %v696
        %761 = vst [vmem:[%s259 + $0xc] sm:$0xf] %v697
        %762 = vst [vmem:[%s259 + $0x10] sm:$0xf] %v698
        %763 = vst [vmem:[%s259 + $0x14] sm:$0xf] %v699
        %764 = vst [vmem:[%s259 + $0x18] sm:$0xf] %v700
        %765 = vst [vmem:[%s259 + $0x1c] sm:$0xf] %v701
        %766 = vst [vmem:[%s259 + $0x20] sm:$0xf] %v702
        %767 = vst [vmem:[%s259 + $0x24] sm:$0xf] %v703
        %768 = vst [vmem:[%s259 + $0x28] sm:$0xf] %v704
        %769 = vst [vmem:[%s259 + $0x2c] sm:$0xf] %v705
        %770 = vst [vmem:[%s259 + $0x30] sm:$0xf] %v706
        %771 = vst [vmem:[%s259 + $0x34] sm:$0xf] %v707
        %772 = vst [vmem:[%s259 + $0x38] sm:$0xf] %v708
        %773 = vst [vmem:[%s259 + $0x3c] sm:$0xf] %v709
        %774 = vst [vmem:[%s259 + $0x40] sm:$0xf] %v710
        %775 = vst [vmem:[%s259 + $0x44] sm:$0xf] %v711
        %776 = vst [vmem:[%s259 + $0x48] sm:$0xf] %v712
        %777 = vst [vmem:[%s259 + $0x4c] sm:$0xf] %v713
        %778 = vst [vmem:[%s259 + $0x50] sm:$0xf] %v714
        %779 = vst [vmem:[%s259 + $0x54] sm:$0xf] %v715
        %780 = vst [vmem:[%s259 + $0x58] sm:$0xf] %v716
        %781 = vst [vmem:[%s259 + $0x5c] sm:$0xf] %v717
        %782 = vst [vmem:[%s259 + $0x60] sm:$0xf] %v718
        %783 = vst [vmem:[%s259 + $0x64] sm:$0xf] %v719
        %784 = vst [vmem:[%s259 + $0x68] sm:$0xf] %v720
        %785 = vst [vmem:[%s259 + $0x6c] sm:$0xf] %v721
        %786 = vst [vmem:[%s259 + $0x70] sm:$0xf] %v722
        %787 = vst [vmem:[%s259 + $0x74] sm:$0xf] %v723
        %788 = vst [vmem:[%s259 + $0x78] sm:$0xf] %v724
        %789 = vst [vmem:[%s259 + $0x7c] sm:$0xf] %v725
        %v790 = vadd.f32 %v504, %v507
        %v791 = vadd.f32 %v790, %v512
        %v792 = vadd.f32 %v791, %v515
        %v793 = vadd.f32 %v792, %v520
        %v794 = vadd.f32 %v793, %v523
        %v795 = vadd.f32 %v794, %v528
        %v796 = vadd.f32 %v795, %v531
        %v797 = vadd.f32 %v796, %v536
        %v798 = vadd.f32 %v797, %v539
        %v799 = vadd.f32 %v798, %v544
        %v800 = vadd.f32 %v799, %v547
        %v801 = vadd.f32 %v800, %v552
        %v802 = vadd.f32 %v801, %v555
        %v803 = vadd.f32 %v802, %v560
        %v804 = vadd.f32 %v803, %v563
        %v805 = vadd.f32 %v804, %v568
        %v806 = vadd.f32 %v805, %v571
        %v807 = vadd.f32 %v806, %v576
        %v808 = vadd.f32 %v807, %v579
        %v809 = vadd.f32 %v808, %v584
        %v810 = vadd.f32 %v809, %v587
        %v811 = vadd.f32 %v810, %v592
        %v812 = vadd.f32 %v811, %v595
        %v813 = vadd.f32 %v812, %v600
        %v814 = vadd.f32 %v813, %v603
        %v815 = vadd.f32 %v814, %v608
        %v816 = vadd.f32 %v815, %v611
        %v817 = vadd.f32 %v816, %v616
        %v818 = vadd.f32 %v817, %v619
        %v819 = vadd.f32 %v818, %v624
        %v820 = vadd.f32 %v819, %v627
        %v821 = vrot.slane %v820, 4
        %v822 = vadd.f32 %v820, %v821
        %v823 = vrot.slane %v822, 2
        %v824 = vadd.f32 %v822, %v823
        %v825 = vrot.slane %v824, 1
        %v826 = vadd.f32 %v824, %v825
        %v827 = vmul.f32 %v504, %v504
        %v828 = vmul.f32 %v507, %v507
        %v829 = vmul.f32 %v512, %v512
        %v830 = vmul.f32 %v515, %v515
        %v831 = vmul.f32 %v520, %v520
        %v832 = vmul.f32 %v523, %v523
        %v833 = vmul.f32 %v528, %v528
        %v834 = vmul.f32 %v531, %v531
        %v835 = vmul.f32 %v536, %v536
        %v836 = vmul.f32 %v539, %v539
        %v837 = vmul.f32 %v544, %v544
        %v838 = vmul.f32 %v547, %v547
        %v839 = vmul.f32 %v552, %v552
        %v840 = vmul.f32 %v555, %v555
        %v841 = vmul.f32 %v560, %v560
        %v842 = vmul.f32 %v563, %v563
        %v843 = vmul.f32 %v568, %v568
        %v844 = vmul.f32 %v571, %v571
        %v845 = vmul.f32 %v576, %v576
        %v846 = vmul.f32 %v579, %v579
        %v847 = vmul.f32 %v584, %v584
        %v848 = vmul.f32 %v587, %v587
        %v849 = vmul.f32 %v592, %v592
        %v850 = vmul.f32 %v595, %v595
        %v851 = vmul.f32 %v600, %v600
        %v852 = vmul.f32 %v603, %v603
        %v853 = vmul.f32 %v608, %v608
        %v854 = vmul.f32 %v611, %v611
        %v855 = vmul.f32 %v616, %v616
        %v856 = vmul.f32 %v619, %v619
        %v857 = vmul.f32 %v624, %v624
        %v858 = vmul.f32 %v627, %v627
        %v859 = vadd.f32 %v827, %v828
        %v860 = vadd.f32 %v859, %v829
        %v861 = vadd.f32 %v860, %v830
        %v862 = vadd.f32 %v861, %v831
        %v863 = vadd.f32 %v862, %v832
        %v864 = vadd.f32 %v863, %v833
        %v865 = vadd.f32 %v864, %v834
        %v866 = vadd.f32 %v865, %v835
        %v867 = vadd.f32 %v866, %v836
        %v868 = vadd.f32 %v867, %v837
        %v869 = vadd.f32 %v868, %v838
        %v870 = vadd.f32 %v869, %v839
        %v871 = vadd.f32 %v870, %v840
        %v872 = vadd.f32 %v871, %v841
        %v873 = vadd.f32 %v872, %v842
        %v874 = vadd.f32 %v873, %v843
        %v875 = vadd.f32 %v874, %v844
        %v876 = vadd.f32 %v875, %v845
        %v877 = vadd.f32 %v876, %v846
        %v878 = vadd.f32 %v877, %v847
        %v879 = vadd.f32 %v878, %v848
        %v880 = vadd.f32 %v879, %v849
        %v881 = vadd.f32 %v880, %v850
        %v882 = vadd.f32 %v881, %v851
        %v883 = vadd.f32 %v882, %v852
        %v884 = vadd.f32 %v883, %v853
        %v885 = vadd.f32 %v884, %v854
        %v886 = vadd.f32 %v885, %v855
        %v887 = vadd.f32 %v886, %v856
        %v888 = vadd.f32 %v887, %v857
        %v889 = vadd.f32 %v888, %v858
        %v890 = vrot.slane %v889, 4
        %v891 = vadd.f32 %v889, %v890
        %v892 = vrot.slane %v891, 2
        %v893 = vadd.f32 %v891, %v892
        %v894 = vrot.slane %v893, 1
        %v895 = vadd.f32 %v893, %v894
        %v896 = vlaneseq
        %v897 = vshrl.u32 %v896, 7
        %vm898 = vcmp.eq.s32.totalorder %v897, 0
        %v899 = vsel %vm898, %v826, 0.0
        %900 = vst [vmem:[%s266] sm:$0xff] %v899
        %v901 = vsel %vm898, %v895, 0.0
        %902 = vst [vmem:[%s273] sm:$0xff] %v901
        %s903 = sand.u32 %s100, 1
        %s904 = scalar_lea.sflag [#allocation4], %s903
        %s905 = sand.u32 %s100, 1
        %s906 = smul.addr %s905, 128
        %s907 = scalar_lea.vmem [#allocation7], %s906
        %s908 = sand.u32 %s26, 1
        %s909 = scalar_lea.sflag [#allocation9], %s908
        %s910 = sand.u32 %s128, 1
        %s911 = smul.addr %s910, 8
        %s912 = scalar_lea.vmem [#allocation8], %s911
        %s913 = sand.u32 %s26, 1
        %s914 = scalar_lea.sflag [#allocation9], %s913
        %s915 = sand.u32 %s156, 1
        %s916 = smul.addr %s915, 8
        %s917 = scalar_lea.vmem [#allocation10], %s916
        // Predicated region
        $region37: #{tpu_custom_call.1} parent=27 // pred_check
          %p918 = pneg %p110
        $region38: #{tpu_custom_call.1} parent=27 // pred_check_branch
          %920 = sbr.rel (%p918) target = $region40
        $region39: #{tpu_custom_call.1} parent=27 // pred_region
          %s921 = smul.u32 32, %s30
          %s923 = ssub.s32 2048, 2048
          %924 = vsyncadd %s904, %s923
          %s925 = sadd.s32 %s31, %s921
          %s926 = smul.addr %s925, 64
          %s927 = scalar_lea.hbm %s2, %s926
          %s928 = sshll.u32 %s907, 4
          %s929 = int_to_ptr.vmem [resolvable:$true] %s928
          %934 = dma.vmem_to_hbm [thread:$0]  %s929, 2048, %s927, %s904, 64, 64, 4
        $region40: #{tpu_custom_call.1} parent=27 // pred_fallthru
          _
        // Predicated region
        $region41: #{tpu_custom_call.1} parent=27 // pred_check
          %p935 = pneg %p138
        $region42: #{tpu_custom_call.1} parent=27 // pred_check_branch
          %937 = sbr.rel (%p935) target = $region44
        $region43: #{tpu_custom_call.1} parent=27 // pred_region
          %s939 = ssub.s32 128, 128
          %940 = vsyncadd %s909, %s939
          %s941 = sadd.s32 %s31, %s30
          %s942 = smul.addr %s941, 128
          %s943 = scalar_lea.hbm %s3, %s942
          %s945 = sshll.u32 %s912, 4
          %s946 = int_to_ptr.vmem [resolvable:$true] %s945
          %948 = dma.vmem_to_hbm [thread:$0]  %s946, 128, %s943, %s909
        $region44: #{tpu_custom_call.1} parent=27 // pred_fallthru
          _
        // Predicated region
        $region45: #{tpu_custom_call.1} parent=27 // pred_check
          %p949 = pneg %p166
        $region46: #{tpu_custom_call.1} parent=27 // pred_check_branch
          %951 = sbr.rel (%p949) target = $region48
        $region47: #{tpu_custom_call.1} parent=27 // pred_region
          %s953 = ssub.s32 128, 128
          %954 = vsyncadd %s914, %s953
          %s955 = sadd.s32 %s31, %s30
          %s956 = smul.addr %s955, 128
          %s957 = scalar_lea.hbm %s4, %s956
          %s959 = sshll.u32 %s917, 4
          %s960 = int_to_ptr.vmem [resolvable:$true] %s959
          %962 = dma.vmem_to_hbm [thread:$0]  %s960, 128, %s957, %s914
        $region48: #{tpu_custom_call.1} parent=27 // pred_fallthru
          _
      $region28: #{tpu_custom_call.1} parent=5 // pred_fallthru
        _
      %p963 = scmp.le.s32.totalorder 2, %s21
      // Predicated region
      $region49: #{tpu_custom_call.1} parent=5 // pred_check
        %p964 = pneg %p963
      $region50: #{tpu_custom_call.1} parent=5 // pred_check_branch
        %966 = sbr.rel (%p964) target = $region52
      $region51: #{tpu_custom_call.1} parent=5 // pred_region
        %s967 = ssub.s32 %s21, 2
        // Predicated region
        $region53: #{tpu_custom_call.1} parent=51 // pred_check
          %p968 = pneg %p116
        $region54: #{tpu_custom_call.1} parent=51 // pred_check_branch
          %970 = sbr.rel (%p968) target = $region56
        $region55: #{tpu_custom_call.1} parent=51 // pred_region
          %s971 = sand.u32 %s101, 1
          %s972 = scalar_lea.sflag [#allocation4], %s971
          %s973 = sand.u32 %s101, 1
          %s974 = smul.addr %s973, 128
          %s975 = scalar_lea.vmem [#allocation7], %s974
          %976 = dma.done %s972, 2048
        $region56: #{tpu_custom_call.1} parent=51 // pred_fallthru
          _
        // Predicated region
        $region57: #{tpu_custom_call.1} parent=51 // pred_check
          %p977 = pneg %p144
        $region58: #{tpu_custom_call.1} parent=51 // pred_check_branch
          %979 = sbr.rel (%p977) target = $region60
        $region59: #{tpu_custom_call.1} parent=51 // pred_region
          %s980 = sand.u32 %s27, 1
          %s981 = scalar_lea.sflag [#allocation9], %s980
          %s982 = sand.u32 %s129, 1
          %s983 = smul.addr %s982, 8
          %s984 = scalar_lea.vmem [#allocation8], %s983
          %985 = dma.done %s981, 128
        $region60: #{tpu_custom_call.1} parent=51 // pred_fallthru
          _
        // Predicated region
        $region61: #{tpu_custom_call.1} parent=51 // pred_check
          %p986 = pneg %p172
        $region62: #{tpu_custom_call.1} parent=51 // pred_check_branch
          %988 = sbr.rel (%p986) target = $region64
        $region63: #{tpu_custom_call.1} parent=51 // pred_region
          %s989 = sand.u32 %s27, 1
          %s990 = scalar_lea.sflag [#allocation9], %s989
          %s991 = sand.u32 %s157, 1
          %s992 = smul.addr %s991, 8
          %s993 = scalar_lea.vmem [#allocation10], %s992
          %994 = dma.done %s990, 128
        $region64: #{tpu_custom_call.1} parent=51 // pred_fallthru
          _
      $region52: #{tpu_custom_call.1} parent=5 // pred_fallthru
        _
    $region6: #{tpu_custom_call.1} parent=1 // loop_footer
      %s25 = sadd.s32 1, %s21
    $region7: #{tpu_custom_call.1} parent=1 // loop_footer_branch
      %20 = sbr.rel target = $region3
    $region8: #{tpu_custom_call.1} parent=1 // loop_exit
      _
    %995 = vsyncpa [#allocation3], 1
    %s996 = scalar_lea.sflag [#allocation3], 1
    %997 = vsyncpa %s996, 1
    %998 = vsyncpa [#allocation6], 1
    %999 = vsyncpa [#allocation4], 1
    %s1000 = scalar_lea.sflag [#allocation4], 1
    %1001 = vsyncpa %s1000, 1
    %1002 = vsyncpa [#allocation9], 1
    %s1003 = scalar_lea.sflag [#allocation9], 1
    %1004 = vsyncpa %s1003, 1

</llo_original>
